<compile_context>
chip_gen: v7x
topology: tpu7x:2x2x1
jax: 0.10.0
libtpu: 0.0.40
codegen_flags: <defaults>
</compile_context>

<pallas_src>
import jax
import jax.numpy as jnp
from jax.experimental import pallas as pl
from jax.experimental.pallas import tpu as pltpu


# ---------------------------------------------------------------------------
# kernels
# ---------------------------------------------------------------------------

def _relu6(x):
    return jnp.minimum(jnp.maximum(x, 0.0), 6.0)


def _make_kernel_nf2(scale):
    # dy-relu: out = max(out * a1, out * a2); a1/a2 arrive as separate tiles.
    def kernel(out_ref, a1_ref, a2_ref, o_ref):
        x = out_ref[...].astype(jnp.float32)                      # act = identity
        a1 = (a1_ref[...].astype(jnp.float32) - 0.5) * scale + 1.0
        a2 = (a2_ref[...].astype(jnp.float32) - 0.5) * scale
        o_ref[...] = jnp.maximum(x * a1, x * a2).astype(o_ref.dtype)
    return kernel


def _make_kernel_nf2_fused(scale, C):
    # fallback when C is not a multiple of the sublane packing: take the
    # full-channel `a` block (block == full extent, always legal) and split
    # inside the kernel.
    def kernel(out_ref, a_ref, o_ref):
        x = out_ref[...].astype(jnp.float32)
        a = a_ref[...].astype(jnp.float32)
        a1 = (a[:, :C, :] - 0.5) * scale + 1.0
        a2 = (a[:, C:, :] - 0.5) * scale
        o_ref[...] = jnp.maximum(x * a1, x * a2).astype(o_ref.dtype)
    return kernel


def _make_kernel_nf1(scale, use_relu6):
    # SE-style: out = act(out) * (a * scale)
    def kernel(out_ref, a_ref, o_ref):
        x = out_ref[...].astype(jnp.float32)
        if use_relu6:
            x = _relu6(x)
        o_ref[...] = (x * (a_ref[...].astype(jnp.float32) * scale)).astype(o_ref.dtype)
    return kernel


def _make_kernel_nf0():
    # plain ReLU6
    def kernel(out_ref, o_ref):
        o_ref[...] = _relu6(out_ref[...].astype(jnp.float32)).astype(o_ref.dtype)
    return kernel


# ---------------------------------------------------------------------------
# tiling helpers
# ---------------------------------------------------------------------------

def _sublane_pack(itemsize):
    # minimum sublane granularity per dtype width (f32: 8, bf16: 16, 8-bit: 32)
    return {4: 8, 2: 16, 1: 32}.get(int(itemsize), 8)


def _choose_blocks(B, C, HW, itemsize, pack, target_bytes):
    """Pick (batch_block, channel_block) for ~target_bytes residual tiles.

    Keeps double-buffered in/a/out tiles well under the default scoped VMEM on
    every generation while amortizing the ~0.35 us per-grid-step overhead.
    Channel blocks are divisors of C that are multiples of `pack` (or the full
    C when no legal split exists); batch blocks are divisors of B and capped
    at B//2 when B >= 2 so the parallel grid can shard across two TensorCores.
    """
    row_bytes = HW * itemsize
    if C * row_bytes <= target_bytes or C % pack != 0:
        cb = C
    else:
        cb = pack
        for d in range(pack, C + 1, pack):
            if C % d == 0 and d * row_bytes <= target_bytes:
                cb = d
    per_b = max(cb * row_bytes, 1)
    bb = max(1, min(B, target_bytes // per_b))
    if B >= 2:
        bb = min(bb, max(1, B // 2))
    while B % bb:           # use a divisor of B: no padded remainder blocks
        bb -= 1
    return bb, cb


# ---------------------------------------------------------------------------
# wrapper
# ---------------------------------------------------------------------------

def dyrelu_forward(x, num_func=2, use_bias=False, scale=2.0, serelu=False,
                   block_target_bytes=1 << 20):
    """Pallas TPU forward for DyReLU. `x` is `out` or `(out, a)`, NCHW."""
    assert -1 <= num_func <= 2
    del use_bias  # unused in the module's forward as well
    if isinstance(x, (tuple, list)):
        out, a = x
    else:
        out, a = x, None
    serelu = bool(serelu and num_func == 1)
    use_relu6 = (num_func == 0) or serelu

    if num_func == -1:
        return out  # identity act, no modulation -> nothing to compute

    B, C, H, W = out.shape
    HW = H * W
    out_flat = out.reshape(B, C, HW)              # spatial axis -> TPU lanes

    pack = _sublane_pack(out.dtype.itemsize)
    if a is not None:
        pack = max(pack, _sublane_pack(jnp.dtype(a.dtype).itemsize))
    bb, cb = _choose_blocks(B, C, HW, out.dtype.itemsize, pack,
                            block_target_bytes)
    n_cb = C // cb
    grid = (B // bb, n_cb)

    io_spec = pl.BlockSpec((bb, cb, HW), lambda b, c: (b, c, 0))
    cparams = pltpu.CompilerParams(
        dimension_semantics=("parallel", "parallel"))
    out_shape = jax.ShapeDtypeStruct((B, C, HW), out.dtype)

    if num_func == 0:
        res = pl.pallas_call(
            _make_kernel_nf0(),
            out_shape=out_shape,
            grid_spec=pltpu.PrefetchScalarGridSpec(
                num_scalar_prefetch=0, grid=grid,
                in_specs=[io_spec], out_specs=io_spec),
            compiler_params=cparams,
            input_output_aliases={0: 0},
        )(out_flat)
        return res.reshape(B, C, H, W)

    # num_func in (1, 2): modulation tensor `a` is required.
    Ba, Ca, Ha, Wa = a.shape
    A = Ha * Wa
    assert Ba == B and A in (1, HW), "a must be (B, Ca, H, W) or (B, Ca, 1, 1)"
    a_flat = a.reshape(B, Ca, A)

    if num_func == 1:
        assert Ca == C
        a_spec = pl.BlockSpec((bb, cb, A), lambda b, c: (b, c, 0))
        res = pl.pallas_call(
            _make_kernel_nf1(scale, use_relu6),
            out_shape=out_shape,
            grid_spec=pltpu.PrefetchScalarGridSpec(
                num_scalar_prefetch=0, grid=grid,
                in_specs=[io_spec, a_spec], out_specs=io_spec),
            compiler_params=cparams,
            input_output_aliases={0: 0},
        )(out_flat, a_flat)
        return res.reshape(B, C, H, W)

    # num_func == 2 (default): dy-relu.
    assert Ca == 2 * C
    if C % pack == 0:
        # Pass `a` twice with two channel-block index maps so the kernel gets
        # clean (bb, cb, A) tiles for a1 and a2 -- no in-kernel sublane
        # slicing. Blocks 0..n_cb-1 of `a` hold a1, blocks n_cb..2*n_cb-1 a2.
        a1_spec = pl.BlockSpec((bb, cb, A), lambda b, c: (b, c, 0))
        a2_spec = pl.BlockSpec((bb, cb, A), lambda b, c: (b, c + n_cb, 0))
        in_specs = [io_spec, a1_spec, a2_spec]
        kernel = _make_kernel_nf2(scale)
        operands = (out_flat, a_flat, a_flat)
    else:
        # C not a multiple of the packing factor -> cb == C, n_cb == 1.
        in_specs = [io_spec,
                    pl.BlockSpec((bb, 2 * C, A), lambda b, c: (b, 0, 0))]
        kernel = _make_kernel_nf2_fused(scale, C)
        operands = (out_flat, a_flat)

    res = pl.pallas_call(
        kernel,
        out_shape=out_shape,
        grid_spec=pltpu.PrefetchScalarGridSpec(
            num_scalar_prefetch=0, grid=grid,
            in_specs=in_specs, out_specs=io_spec),
        compiler_params=cparams,
        input_output_aliases={0: 0},
    )(*operands)
    return res.reshape(B, C, H, W)


# ---------------------------------------------------------------------------
# pure-JAX reference mirroring the PyTorch forward
# ---------------------------------------------------------------------------

def _ref_forward(x, num_func=2, scale=2.0, serelu=False):
    if isinstance(x, (tuple, list)):
        out, a = x
    else:
        out, a = x, None
    serelu = serelu and num_func == 1
    if num_func == 0 or serelu:
        out = jnp.clip(out, 0.0, 6.0)
    if num_func == 1:
        return out * (a * scale)
    if num_func == 2:
        Ca = a.shape[1]
        a1, a2 = a[:, :Ca // 2], a[:, Ca // 2:]
        a1 = (a1 - 0.5) * scale + 1.0
        a2 = (a2 - 0.5) * scale
        return jnp.maximum(out * a1, out * a2)
    return out


if __name__ == "__main__":
    # small shapes consistent with the module: NCHW residual + 2C-channel
    # dy-relu coefficients (both full-spatial and the typical 1x1 form).
    B, C, H, W = 2, 16, 16, 16
    key = jax.random.PRNGKey(0)
    k1, k2, k3, k4 = jax.random.split(key, 4)

    out = jax.random.normal(k1, (B, C, H, W), dtype=jnp.float32)
    a_dy_full = jax.random.uniform(k2, (B, 2 * C, H, W), dtype=jnp.float32)
    a_dy_chan = jax.random.uniform(k3, (B, 2 * C, 1, 1), dtype=jnp.float32)
    a_se = jax.random.uniform(k4, (B, C, 1, 1), dtype=jnp.float32)

    cases = [
        ((out, a_dy_full), dict(num_func=2, scale=2.0)),   # default config
        ((out, a_dy_chan), dict(num_func=2, scale=2.0)),   # per-channel coeffs
        # tiny tile target to exercise the channel-blocked grid path
        ((out, a_dy_full), dict(num_func=2, scale=2.0, block_target_bytes=8192)),
        ((out, a_dy_chan), dict(num_func=2, scale=2.0, block_target_bytes=8192)),
        ((out, a_se), dict(num_func=1, scale=2.0)),        # SE mode
        (out, dict(num_func=0)),                           # plain ReLU6
    ]

    for x, kw in cases:
        ref_kw = {k: v for k, v in kw.items()
                  if k in ("num_func", "scale", "serelu")}
        y_ref = _ref_forward(x, **ref_kw)
        y = jax.block_until_ready(dyrelu_forward(x, **kw))
        assert y.shape == y_ref.shape
        assert jnp.allclose(y, y_ref, atol=1e-5, rtol=1e-5), f"mismatch for {kw}"

    print("KERNEL_OK")
</pallas_src>

<mosaic_0001>
module attributes {stable_mosaic.version = 11 : i64} {
  func.func @kernel(%arg0: i32, %arg1: i32, %arg2: memref<1x16x256xf32, #tpu.memory_space<vmem>>, %arg3: memref<1x16x256xf32, #tpu.memory_space<vmem>>, %arg4: memref<1x16x256xf32, #tpu.memory_space<vmem>>, %arg5: memref<1x16x256xf32, #tpu.memory_space<vmem>>) attributes {dimension_semantics = [#tpu.dimension_semantics<parallel>, #tpu.dimension_semantics<parallel>], iteration_bounds = array<i64: 2, 1>, scalar_prefetch = 0 : i64, scratch_operands = 0 : i64, tpu.core_type = #tpu.core_type<tc>, window_params = [{transform_indices = @transform_0, window_bounds = array<i64: 1, 16, 256>}, {transform_indices = @transform_1, window_bounds = array<i64: 1, 16, 256>}, {transform_indices = @transform_2, window_bounds = array<i64: 1, 16, 256>}, {transform_indices = @transform_3, window_bounds = array<i64: 1, 16, 256>}]} {
    %c0 = arith.constant 0 : index
    %c0_0 = arith.constant 0 : index
    %c0_1 = arith.constant 0 : index
    %0 = vector.load %arg2[%c0, %c0_0, %c0_1] : memref<1x16x256xf32, #tpu.memory_space<vmem>>, vector<1x16x256xf32>
    %c0_2 = arith.constant 0 : index
    %c0_3 = arith.constant 0 : index
    %c0_4 = arith.constant 0 : index
    %1 = vector.load %arg3[%c0_2, %c0_3, %c0_4] : memref<1x16x256xf32, #tpu.memory_space<vmem>>, vector<1x16x256xf32>
    %cst = arith.constant 5.000000e-01 : f32
    %2 = vector.broadcast %cst : f32 to vector<1x16x256xf32>
    %3 = arith.subf %1, %2 : vector<1x16x256xf32>
    %cst_5 = arith.constant 2.000000e+00 : f32
    %4 = vector.broadcast %cst_5 : f32 to vector<1x16x256xf32>
    %5 = arith.mulf %3, %4 : vector<1x16x256xf32>
    %cst_6 = arith.constant 1.000000e+00 : f32
    %6 = vector.broadcast %cst_6 : f32 to vector<1x16x256xf32>
    %7 = arith.addf %5, %6 : vector<1x16x256xf32>
    %c0_7 = arith.constant 0 : index
    %c0_8 = arith.constant 0 : index
    %c0_9 = arith.constant 0 : index
    %8 = vector.load %arg4[%c0_7, %c0_8, %c0_9] : memref<1x16x256xf32, #tpu.memory_space<vmem>>, vector<1x16x256xf32>
    %cst_10 = arith.constant 5.000000e-01 : f32
    %9 = vector.broadcast %cst_10 : f32 to vector<1x16x256xf32>
    %10 = arith.subf %8, %9 : vector<1x16x256xf32>
    %cst_11 = arith.constant 2.000000e+00 : f32
    %11 = vector.broadcast %cst_11 : f32 to vector<1x16x256xf32>
    %12 = arith.mulf %10, %11 : vector<1x16x256xf32>
    %13 = arith.mulf %0, %7 : vector<1x16x256xf32>
    %14 = arith.mulf %0, %12 : vector<1x16x256xf32>
    %15 = arith.maximumf %13, %14 : vector<1x16x256xf32>
    %c0_12 = arith.constant 0 : index
    %c0_13 = arith.constant 0 : index
    %c0_14 = arith.constant 0 : index
    %16 = vector.load %arg5[%c0_12, %c0_13, %c0_14] : memref<1x16x256xf32, #tpu.memory_space<vmem>>, vector<1x16x256xf32>
    tpu.vector_store %arg5[%c0_12, %c0_13, %c0_14], %15 {strides = array<i32>} : memref<1x16x256xf32, #tpu.memory_space<vmem>>, vector<1x16x256xf32>,
    return
  }
  func.func @transform_0(%arg0: i32, %arg1: i32) -> (i32, i32, i32) {
    %c0_i32 = arith.constant 0 : i32
    %c0_i32_0 = arith.constant 0 : i32
    return %arg0, %arg1, %c0_i32 : i32, i32, i32
  }
  func.func @transform_1(%arg0: i32, %arg1: i32) -> (i32, i32, i32) {
    %c0_i32 = arith.constant 0 : i32
    %c0_i32_0 = arith.constant 0 : i32
    return %arg0, %arg1, %c0_i32 : i32, i32, i32
  }
  func.func @transform_2(%arg0: i32, %arg1: i32) -> (i32, i32, i32) {
    %c1_i32 = arith.constant 1 : i32
    %0 = arith.addi %arg1, %c1_i32 : i32
    %c0_i32 = arith.constant 0 : i32
    %c0_i32_0 = arith.constant 0 : i32
    return %arg0, %0, %c0_i32 : i32, i32, i32
  }
  func.func @transform_3(%arg0: i32, %arg1: i32) -> (i32, i32, i32) {
    %c0_i32 = arith.constant 0 : i32
    %c0_i32_0 = arith.constant 0 : i32
    return %arg0, %arg1, %c0_i32 : i32, i32, i32
  }
}

</mosaic_0001>

<llo_original>
// kernel: tpu_custom_call.1
$region0: #{tpu_custom_call.1}
  #allocation0 [shape = 'u32[]', space=smem, size = 0x4, offset = 0x4, fixed_abs, tag = 'smem constant byte address 0x4 - core index']
  #allocation1 [shape = 'u32[144,128]{1,0:T(1,128)}', space=vmem, size = 0x12000, scoped, tag = 'internal scratch']
  %s0 = inlined_call_operand.hbm [shape: f32[2,16,256], index: 0, kind: input, shape index: {}, may-alias: {0,3}]
  %s1 = inlined_call_operand.vmem [shape: f32[2,32,256], index: 1, kind: input, shape index: {}]
  %s2 = inlined_call_operand.hbm [shape: f32[2,32,256], index: 2, kind: input, shape index: {}]
  %s3 = inlined_call_operand.hbm [shape: f32[2,16,256], index: 3, kind: output, shape index: {}, may-alias: {0,3}]
  %s4 = sld [smem:[#allocation0]]
  $region53: #{tpu_custom_call.1} parent=0
    _
  %s6 = ssub.s32 1, %s4
  %s7 = scalar_select 0, %s6, %s4
  $region1: #{tpu_custom_call.1} parent=0
    #allocation2 [shape = 'u8[32768]{0}', space=vmem, size = 0x8000, scoped, tag = 'input window, operand 0']
    #allocation3 [shape = 's32[2]{0}', space=sflag, size = 0x8, scoped, tag = 'scoped memory for tpu_custom_call.1']
    #allocation4 [shape = 's32[2]{0}', space=sflag, size = 0x8, scoped, tag = 'scoped memory for tpu_custom_call.1']
    #allocation5 [shape = 'u8[32768]{0}', space=vmem, size = 0x8000, scoped, tag = 'input window, operand 2']
    #allocation6 [shape = 's32[2]{0}', space=sflag, size = 0x8, scoped, tag = 'scoped memory for tpu_custom_call.1']
    #allocation7 [shape = 'u8[32768]{0}', space=vmem, size = 0x8000, scoped, tag = 'output window, operand 0']
    %8 = vsyncpa [#allocation3], 0
    %s9 = scalar_lea.sflag [#allocation3], 1
    %10 = vsyncpa %s9, 0
    %11 = vsyncpa [#allocation6], 0
    %s12 = scalar_lea.sflag [#allocation6], 1
    %13 = vsyncpa %s12, 0
    %14 = vsyncpa [#allocation4], 0
    %s15 = scalar_lea.sflag [#allocation4], 1
    %16 = vsyncpa %s15, 0
    loop: start=0, step=1, limit=4
    $region2: #{tpu_custom_call.1} parent=1 // loop_pre_header
      _
    $region3: #{tpu_custom_call.1} parent=1 // loop_header
      %s18 = sphi 0, %s22
      %p19 = scmp.ge.s32.totalorder %s18, 4
      %s25 = sphi 0, %s37
      %s26 = sphi 0, %s33
      %s27 = sphi 0, %s25
      %s28 = sphi 0, %s26
      %s29 = sphi 0, %s27
      %s30 = sphi 0, %s28
      %s42 = sphi 0, %s44
      %s45 = sphi 0, %s42
      %s46 = sphi 0, %s45
      %s62 = sphi 0, %s46
      %s70 = sphi 0, %s72
      %s73 = sphi 0, %s70
      %s74 = sphi 0, %s73
      %s90 = sphi 0, %s74
      %s100 = sphi 0, %s102
      %s103 = sphi 0, %s100
      %s104 = sphi 0, %s103
      %s120 = sphi 0, %s104
      %s128 = sphi 0, %s130
      %s131 = sphi 0, %s128
      %s132 = sphi 0, %s131
      %s148 = sphi 0, %s132
    $region4: #{tpu_custom_call.1} parent=1 // loop_header_branch
      %21 = sbr.rel (%p19) target = $region8
    $region5: #{tpu_custom_call.1} parent=1 // loop_body
      %s23 = ssub.s32 %s18, 1
      %s24 = ssub.s32 %s18, 2
      %s31 = sadd.s32 1, %s26
      %p32 = scmp.ge.s32.totalorder %s31, 1
      %s33 = scalar_select %p32, 0, %s31
      %s34 = sadd.s32 1, %s25
      %s35 = scalar_select %p32, %s34, %s25
      %p36 = scmp.ge.s32.totalorder %s35, 2
      %s37 = scalar_select %p36, 0, %s35
      %s38 = ssub.s32 %s25, %s37
      %s39 = ssub.s32 %s26, %s33
      %s40 = sor.u32 %s38, %s39
      %p41 = scmp.eq.s32.totalorder %s40, 0
      %s43 = sadd.s32 %s42, 1
      %s44 = scalar_select %p41, %s42, %s43
      %p47 = pneg %p41
      %p48 = scmp.eq.s32.totalorder %s18, 1
      %p49 = por %p47, %p48
      %p50 = scmp.ne.s32.totalorder %s42, %s45
      %p51 = scmp.eq.s32.totalorder %s18, 0
      %p52 = por %p50, %p51
      %p53 = scmp.ne.s32.totalorder %s42, %s45
      %p54 = scmp.eq.s32.totalorder %s23, 1
      %p55 = por %p53, %p54
      %p56 = scmp.ne.s32.totalorder %s45, %s46
      %p57 = scmp.eq.s32.totalorder %s23, 0
      %p58 = por %p56, %p57
      %p59 = scmp.ne.s32.totalorder %s45, %s46
      %p60 = scmp.eq.s32.totalorder %s24, 1
      %p61 = por %p59, %p60
      %p63 = scmp.ne.s32.totalorder %s46, %s62
      %p64 = scmp.eq.s32.totalorder %s24, 0
      %p65 = por %p63, %p64
      %s66 = ssub.s32 %s25, %s37
      %s67 = ssub.s32 %s26, %s33
      %s68 = sor.u32 %s66, %s67
      %p69 = scmp.eq.s32.totalorder %s68, 0
      %s71 = sadd.s32 %s70, 1
      %s72 = scalar_select %p69, %s70, %s71
      %p75 = pneg %p69
      %p76 = scmp.eq.s32.totalorder %s18, 1
      %p77 = por %p75, %p76
      %p78 = scmp.ne.s32.totalorder %s70, %s73
      %p79 = scmp.eq.s32.totalorder %s18, 0
      %p80 = por %p78, %p79
      %p81 = scmp.ne.s32.totalorder %s70, %s73
      %p82 = scmp.eq.s32.totalorder %s23, 1
      %p83 = por %p81, %p82
      %p84 = scmp.ne.s32.totalorder %s73, %s74
      %p85 = scmp.eq.s32.totalorder %s23, 0
      %p86 = por %p84, %p85
      %p87 = scmp.ne.s32.totalorder %s73, %s74
      %p88 = scmp.eq.s32.totalorder %s24, 1
      %p89 = por %p87, %p88
      %p91 = scmp.ne.s32.totalorder %s74, %s90
      %p92 = scmp.eq.s32.totalorder %s24, 0
      %p93 = por %p91, %p92
      %s94 = sadd.s32 %s26, 1
      %s95 = sadd.s32 %s33, 1
      %s96 = ssub.s32 %s25, %s37
      %s97 = ssub.s32 %s94, %s95
      %s98 = sor.u32 %s96, %s97
      %p99 = scmp.eq.s32.totalorder %s98, 0
      %s101 = sadd.s32 %s100, 1
      %s102 = scalar_select %p99, %s100, %s101
      %p105 = pneg %p99
      %p106 = scmp.eq.s32.totalorder %s18, 1
      %p107 = por %p105, %p106
      %p108 = scmp.ne.s32.totalorder %s100, %s103
      %p109 = scmp.eq.s32.totalorder %s18, 0
      %p110 = por %p108, %p109
      %p111 = scmp.ne.s32.totalorder %s100, %s103
      %p112 = scmp.eq.s32.totalorder %s23, 1
      %p113 = por %p111, %p112
      %p114 = scmp.ne.s32.totalorder %s103, %s104
      %p115 = scmp.eq.s32.totalorder %s23, 0
      %p116 = por %p114, %p115
      %p117 = scmp.ne.s32.totalorder %s103, %s104
      %p118 = scmp.eq.s32.totalorder %s24, 1
      %p119 = por %p117, %p118
      %p121 = scmp.ne.s32.totalorder %s104, %s120
      %p122 = scmp.eq.s32.totalorder %s24, 0
      %p123 = por %p121, %p122
      %s124 = ssub.s32 %s25, %s37
      %s125 = ssub.s32 %s26, %s33
      %s126 = sor.u32 %s124, %s125
      %p127 = scmp.eq.s32.totalorder %s126, 0
      %s129 = sadd.s32 %s128, 1
      %s130 = scalar_select %p127, %s128, %s129
      %p133 = pneg %p127
      %p134 = scmp.eq.s32.totalorder %s18, 1
      %p135 = por %p133, %p134
      %p136 = scmp.ne.s32.totalorder %s128, %s131
      %p137 = scmp.eq.s32.totalorder %s18, 0
      %p138 = por %p136, %p137
      %p139 = scmp.ne.s32.totalorder %s128, %s131
      %p140 = scmp.eq.s32.totalorder %s23, 1
      %p141 = por %p139, %p140
      %p142 = scmp.ne.s32.totalorder %s131, %s132
      %p143 = scmp.eq.s32.totalorder %s23, 0
      %p144 = por %p142, %p143
      %p145 = scmp.ne.s32.totalorder %s131, %s132
      %p146 = scmp.eq.s32.totalorder %s24, 1
      %p147 = por %p145, %p146
      %p149 = scmp.ne.s32.totalorder %s132, %s148
      %p150 = scmp.eq.s32.totalorder %s24, 0
      %p151 = por %p149, %p150
      %p152 = scmp.le.s32.totalorder 1, %s18
      %p153 = scmp.lt.s32.totalorder %s18, 3
      %p154 = pnand %p152, %p153
      %p155 = pneg %p154
      // Predicated region
      $region9: #{tpu_custom_call.1} parent=5 // pred_check
        _
      $region10: #{tpu_custom_call.1} parent=5 // pred_check_branch
        %157 = sbr.rel (%p154) target = $region12
      $region11: #{tpu_custom_call.1} parent=5 // pred_region
        %s158 = ssub.s32 %s18, 1
      $region12: #{tpu_custom_call.1} parent=5 // pred_fallthru
        _
      %p159 = scmp.lt.s32.totalorder %s18, 2
      // Predicated region
      $region13: #{tpu_custom_call.1} parent=5 // pred_check
        %p160 = pneg %p159
      $region14: #{tpu_custom_call.1} parent=5 // pred_check_branch
        %162 = sbr.rel (%p160) target = $region16
      $region15: #{tpu_custom_call.1} parent=5 // pred_region
        // Predicated region
        $region17: #{tpu_custom_call.1} parent=15 // pred_check
          %p163 = pneg %p52
        $region18: #{tpu_custom_call.1} parent=15 // pred_check_branch
          %165 = sbr.rel (%p163) target = $region20
        $region19: #{tpu_custom_call.1} parent=15 // pred_region
          %s166 = sand.u32 %s42, 1
          %s167 = scalar_lea.sflag [#allocation3], %s166
          %s168 = sand.u32 %s42, 1
          %s169 = smul.addr %s168, 32
          %s170 = scalar_lea.vmem [#allocation2], %s169
          %s171 = smul.u32 2, %s26
          %s173 = ssub.s32 512, 512
          %174 = vsyncadd %s167, %s173
          %s175 = smul.addr %s171, 2
          %s176 = smul.addr %s25, 4
          %s177 = sadd.s32 %s175, %s176
          %s178 = smul.addr %s177, 128
          %s179 = scalar_lea.hbm %s0, %s178
          %s180 = sshll.u32 %s170, 4
          %s181 = int_to_ptr.vmem [resolvable:$true] %s180
          %186 = dma.hbm_to_vmem [thread:$0]  %s179, 512, %s181, %s167, 256, 256, 16
        $region20: #{tpu_custom_call.1} parent=15 // pred_fallthru
          _
        // Predicated region
        $region21: #{tpu_custom_call.1} parent=15 // pred_check
          %p187 = pneg %p80
        $region22: #{tpu_custom_call.1} parent=15 // pred_check_branch
          %189 = sbr.rel (%p187) target = $region24
        $region23: #{tpu_custom_call.1} parent=15 // pred_region
          %s190 = smul.u32 2, %s26
          %p191 = scmp.lt.s32.totalorder %s25, 1
          %s192 = scalar_select %p191, %s25, 1
          %p193 = scmp.lt.s32.totalorder %s190, 3
          %s194 = scalar_select %p193, %s190, 3
          %s195 = smul.addr %s194, 2
          %s196 = smul.addr %s192, 8
          %s197 = sadd.s32 %s195, %s196
          %s198 = smul.addr %s197, 8
          %s199 = scalar_lea.vmem %s1, %s198
          %s200 = smul.u32 2, %s26
        $region24: #{tpu_custom_call.1} parent=15 // pred_fallthru
          _
        // Predicated region
        $region25: #{tpu_custom_call.1} parent=15 // pred_check
          %p201 = pneg %p110
        $region26: #{tpu_custom_call.1} parent=15 // pred_check_branch
          %203 = sbr.rel (%p201) target = $region28
        $region27: #{tpu_custom_call.1} parent=15 // pred_region
          %s204 = sand.u32 %s100, 1
          %s205 = scalar_lea.sflag [#allocation6], %s204
          %s206 = sand.u32 %s100, 1
          %s207 = smul.addr %s206, 32
          %s208 = scalar_lea.vmem [#allocation5], %s207
          %s209 = sadd.s32 %s26, 1
          %s210 = smul.u32 2, %s209
          %s212 = ssub.s32 512, 512
          %213 = vsyncadd %s205, %s212
          %s214 = smul.addr %s210, 2
          %s215 = smul.addr %s25, 8
          %s216 = sadd.s32 %s214, %s215
          %s217 = smul.addr %s216, 128
          %s218 = scalar_lea.hbm %s2, %s217
          %s219 = sshll.u32 %s208, 4
          %s220 = int_to_ptr.vmem [resolvable:$true] %s219
          %225 = dma.hbm_to_vmem [thread:$0]  %s218, 512, %s220, %s205, 256, 256, 16
        $region28: #{tpu_custom_call.1} parent=15 // pred_fallthru
          _
      $region16: #{tpu_custom_call.1} parent=5 // pred_fallthru
        _
      %p226 = scmp.le.s32.totalorder 1, %s18
      %p227 = scmp.lt.s32.totalorder %s18, 3
      %p228 = pnand %p226, %p227
      %p229 = pneg %p228
      // Predicated region
      $region29: #{tpu_custom_call.1} parent=5 // pred_check
        _
      $region30: #{tpu_custom_call.1} parent=5 // pred_check_branch
        %231 = sbr.rel (%p228) target = $region32
      $region31: #{tpu_custom_call.1} parent=5 // pred_region
        %s232 = ssub.s32 %s18, 1
        %s233 = sand.u32 %s45, 1
        %s234 = scalar_lea.sflag [#allocation3], %s233
        %s235 = sand.u32 %s45, 1
        %s236 = smul.addr %s235, 32
        %s237 = scalar_lea.vmem [#allocation2], %s236
        // Predicated region
        $region33: #{tpu_custom_call.1} parent=31 // pred_check
          %p238 = pneg %p58
        $region34: #{tpu_custom_call.1} parent=31 // pred_check_branch
          %240 = sbr.rel (%p238) target = $region36
        $region35: #{tpu_custom_call.1} parent=31 // pred_region
          %241 = dma.done %s234, 512
        $region36: #{tpu_custom_call.1} parent=31 // pred_fallthru
          _
        %s242 = sand.u32 %s103, 1
        %s243 = scalar_lea.sflag [#allocation6], %s242
        %s244 = sand.u32 %s103, 1
        %s245 = smul.addr %s244, 32
        %s246 = scalar_lea.vmem [#allocation5], %s245
        // Predicated region
        $region37: #{tpu_custom_call.1} parent=31 // pred_check
          %p247 = pneg %p116
        $region38: #{tpu_custom_call.1} parent=31 // pred_check_branch
          %249 = sbr.rel (%p247) target = $region40
        $region39: #{tpu_custom_call.1} parent=31 // pred_region
          %250 = dma.done %s243, 512
        $region40: #{tpu_custom_call.1} parent=31 // pred_fallthru
          _
        %s251 = sand.u32 %s45, 1
        %s252 = scalar_lea.sflag [#allocation3], %s251
        %s253 = sand.u32 %s45, 1
        %s254 = smul.addr %s253, 32
        %s255 = scalar_lea.vmem [#allocation2], %s254
        %p256 = pneg %p58
        %p257 = pneg %p55
        %s258 = smul.u32 2, %s28
        %p259 = scmp.lt.s32.totalorder %s27, 1
        %s260 = scalar_select %p259, %s27, 1
        %p261 = scmp.lt.s32.totalorder %s258, 3
        %s262 = scalar_select %p261, %s258, 3
        %s263 = smul.addr %s262, 2
        %s264 = smul.addr %s260, 8
        %s265 = sadd.s32 %s263, %s264
        %s266 = smul.addr %s265, 8
        %s267 = scalar_lea.vmem %s1, %s266
        %p268 = pneg %p86
        %p269 = pneg %p83
        %s270 = sand.u32 %s103, 1
        %s271 = scalar_lea.sflag [#allocation6], %s270
        %s272 = sand.u32 %s103, 1
        %s273 = smul.addr %s272, 32
        %s274 = scalar_lea.vmem [#allocation5], %s273
        %p275 = pneg %p116
        %p276 = pneg %p113
        %p277 = pneg %p144
        %p278 = pneg %p141
        %s279 = sand.u32 %s131, 1
        %s280 = scalar_lea.sflag [#allocation4], %s279
        %s281 = sand.u32 %s131, 1
        %s282 = smul.addr %s281, 32
        %s283 = scalar_lea.vmem [#allocation7], %s282
        %s284 = smul.u32 2, %s28
        %s285 = smul.u32 2, %s28
        %p286 = scmp.lt.s32.totalorder %s27, 1
        %s287 = scalar_select %p286, %s27, 1
        %p288 = scmp.lt.s32.totalorder %s285, 3
        %s289 = scalar_select %p288, %s285, 3
        %s290 = smul.addr %s289, 2
        %s291 = smul.addr %s287, 8
        %s292 = sadd.s32 %s290, %s291
        %s293 = smul.addr %s292, 8
        %s294 = scalar_lea.vmem %s1, %s293
        %s295 = smul.u32 2, %s28
        %s296 = sadd.s32 %s28, 1
        %s297 = smul.u32 2, %s296
        %s298 = smul.u32 2, %s28
        %v299 = vld [vmem:[%s237] sm:$0xff]
        %v300 = vld [vmem:[%s237 + $0x8] sm:$0xff]
        %v301 = vld [vmem:[%s237 + $0x10] sm:$0xff]
        %v302 = vld [vmem:[%s237 + $0x18] sm:$0xff]
        %v303 = vld [vmem:[%s294] sm:$0xff]
        %v304 = vld [vmem:[%s294 + $0x8] sm:$0xff]
        %v305 = vld [vmem:[%s294 + $0x10] sm:$0xff]
        %v306 = vld [vmem:[%s294 + $0x18] sm:$0xff]
        %v307 = vsub.f32 %v303, 0.5
        %v308 = vsub.f32 %v304, 0.5
        %v309 = vsub.f32 %v305, 0.5
        %v310 = vsub.f32 %v306, 0.5
        %v311 = vmul.f32 %v307, 2.0
        %v312 = vmul.f32 %v308, 2.0
        %v313 = vmul.f32 %v309, 2.0
        %v314 = vmul.f32 %v310, 2.0
        %v315 = vadd.f32 %v311, 1.0
        %v316 = vadd.f32 %v312, 1.0
        %v317 = vadd.f32 %v313, 1.0
        %v318 = vadd.f32 %v314, 1.0
        %v319 = vld [vmem:[%s246] sm:$0xff]
        %v320 = vld [vmem:[%s246 + $0x8] sm:$0xff]
        %v321 = vld [vmem:[%s246 + $0x10] sm:$0xff]
        %v322 = vld [vmem:[%s246 + $0x18] sm:$0xff]
        %v323 = vsub.f32 %v319, 0.5
        %v324 = vsub.f32 %v320, 0.5
        %v325 = vsub.f32 %v321, 0.5
        %v326 = vsub.f32 %v322, 0.5
        %v327 = vmul.f32 %v323, 2.0
        %v328 = vmul.f32 %v324, 2.0
        %v329 = vmul.f32 %v325, 2.0
        %v330 = vmul.f32 %v326, 2.0
        %v331 = vmul.f32 %v299, %v315
        %v332 = vmul.f32 %v300, %v316
        %v333 = vmul.f32 %v301, %v317
        %v334 = vmul.f32 %v302, %v318
        %v335 = vmul.f32 %v299, %v327
        %v336 = vmul.f32 %v300, %v328
        %v337 = vmul.f32 %v301, %v329
        %v338 = vmul.f32 %v302, %v330
        %v339 = vmax.f32 %v331, %v335
        %v340 = vmax.f32 %v332, %v336
        %v341 = vmax.f32 %v333, %v337
        %v342 = vmax.f32 %v334, %v338
        %343 = vst [vmem:[%s283] sm:$0xff] %v339
        %344 = vst [vmem:[%s283 + $0x8] sm:$0xff] %v340
        %345 = vst [vmem:[%s283 + $0x10] sm:$0xff] %v341
        %346 = vst [vmem:[%s283 + $0x18] sm:$0xff] %v342
        %s347 = sand.u32 %s131, 1
        %s348 = scalar_lea.sflag [#allocation4], %s347
        %s349 = sand.u32 %s131, 1
        %s350 = smul.addr %s349, 32
        %s351 = scalar_lea.vmem [#allocation7], %s350
        // Predicated region
        $region41: #{tpu_custom_call.1} parent=31 // pred_check
          %p352 = pneg %p141
        $region42: #{tpu_custom_call.1} parent=31 // pred_check_branch
          %354 = sbr.rel (%p352) target = $region44
        $region43: #{tpu_custom_call.1} parent=31 // pred_region
          %s355 = smul.u32 2, %s28
          %s357 = ssub.s32 512, 512
          %358 = vsyncadd %s348, %s357
          %s359 = smul.addr %s355, 2
          %s360 = smul.addr %s27, 4
          %s361 = sadd.s32 %s359, %s360
          %s362 = smul.addr %s361, 128
          %s363 = scalar_lea.hbm %s3, %s362
          %s364 = sshll.u32 %s351, 4
          %s365 = int_to_ptr.vmem [resolvable:$true] %s364
          %370 = dma.vmem_to_hbm [thread:$0]  %s365, 512, %s363, %s348, 256, 256, 16
        $region44: #{tpu_custom_call.1} parent=31 // pred_fallthru
          _
      $region32: #{tpu_custom_call.1} parent=5 // pred_fallthru
        _
      %p371 = scmp.le.s32.totalorder 2, %s18
      // Predicated region
      $region45: #{tpu_custom_call.1} parent=5 // pred_check
        %p372 = pneg %p371
      $region46: #{tpu_custom_call.1} parent=5 // pred_check_branch
        %374 = sbr.rel (%p372) target = $region48
      $region47: #{tpu_custom_call.1} parent=5 // pred_region
        %s375 = ssub.s32 %s18, 2
        // Predicated region
        $region49: #{tpu_custom_call.1} parent=47 // pred_check
          %p376 = pneg %p147
        $region50: #{tpu_custom_call.1} parent=47 // pred_check_branch
          %378 = sbr.rel (%p376) target = $region52
        $region51: #{tpu_custom_call.1} parent=47 // pred_region
          %s379 = sand.u32 %s132, 1
          %s380 = scalar_lea.sflag [#allocation4], %s379
          %s381 = sand.u32 %s132, 1
          %s382 = smul.addr %s381, 32
          %s383 = scalar_lea.vmem [#allocation7], %s382
          %384 = dma.done %s380, 512
        $region52: #{tpu_custom_call.1} parent=47 // pred_fallthru
          _
      $region48: #{tpu_custom_call.1} parent=5 // pred_fallthru
        _
    $region6: #{tpu_custom_call.1} parent=1 // loop_footer
      %s22 = sadd.s32 1, %s18
    $region7: #{tpu_custom_call.1} parent=1 // loop_footer_branch
      %17 = sbr.rel target = $region3
    $region8: #{tpu_custom_call.1} parent=1 // loop_exit
      _
    %385 = vsyncpa [#allocation3], 1
    %s386 = scalar_lea.sflag [#allocation3], 1
    %387 = vsyncpa %s386, 1
    %388 = vsyncpa [#allocation6], 1
    %s389 = scalar_lea.sflag [#allocation6], 1
    %390 = vsyncpa %s389, 1
    %391 = vsyncpa [#allocation4], 1
    %s392 = scalar_lea.sflag [#allocation4], 1
    %393 = vsyncpa %s392, 1

</llo_original>
